<compile_context>
chip_gen: v5e
topology: v5e:2x2
jax: 0.10.0
libtpu: 0.0.40
codegen_flags: <defaults>
</compile_context>

<pallas_src>
import functools

import numpy as np
import jax
import jax.numpy as jnp
from jax import lax
from jax.experimental import pallas as pl
from jax.experimental.pallas import tpu as pltpu


_VMEM_LIMIT = 30 * 1024 * 1024          # > v5e's 16 MiB scoped default, < v7x physical


def _pick_lane_tile(rows_p, d, cap=4096, budget=10 * 1024 * 1024):
    """Largest feature(lane) tile that keeps the double-buffered f32 input
    streams + the in-VMEM X tile inside ~10 MiB (review item 3: cap raised to
    4096; the budget, not the cap, should bind only for very large batches)."""
    per_lane = 4 * (2 * (rows_p + 4) + 2 * rows_p)   # dbl-buffered inputs + X scratch
    td = max(128, min(cap, (budget // per_lane) // 128 * 128))
    return d if d <= td else td


# ----------------------------------------------------------------------------
# Kernel 1: build X tile in VMEM scratch + accumulate Gram (and running mean).
# X never touches HBM.
# ----------------------------------------------------------------------------
def _build_gram_kernel(sv_ref, comp_ref, batch_ref, rmean_ref, gram_ref,
                       *rest, k, n, rows_p, d, lane_tile, half, split,
                       n_samples, n_batch, n_total, center, corr_scale):
    if center:
        mean_ref, x_scratch = rest
    else:
        mean_ref = None
        x_scratch = rest[0]

    if split:                                             # v7x: 2-TC feature split
        c = pl.program_id(0)
        j = pl.program_id(1)
        t = c * half + j                                  # global tile index
    else:
        j = pl.program_id(0)
        t = j

    rmean = rmean_ref[...]                                # [1, TD]
    batch = batch_ref[...]                                # [n, TD]
    sv = sv_ref[...][:, 0:1]                              # [k, 1] (lane-dense operand)

    x_scratch[0:k, :] = sv * comp_ref[...]                # scaled components
    if center:
        batch_mean = jnp.mean(batch, axis=0, keepdims=True)
        mean_ref[...] = (n_samples * rmean + n_batch * batch_mean) / n_total
        x_scratch[k:k + n, :] = batch - batch_mean
        x_scratch[k + n:k + n + 1, :] = corr_scale * (rmean - batch_mean)
    else:
        x_scratch[k:k + n, :] = batch
        x_scratch[k + n:k + n + 1, :] = corr_scale * rmean
    if rows_p > k + n + 1:                                # sublane-alignment pad rows
        x_scratch[k + n + 1:, :] = jnp.zeros(
            (rows_p - (k + n + 1), x_scratch.shape[1]), jnp.float32)

    xt = x_scratch[...]                                   # [rows_p, TD]
    if d % lane_tile != 0:
        # mask lanes of a partial last tile before the cross-lane contraction
        col = lax.broadcasted_iota(jnp.int32, xt.shape, 1)
        xt = jnp.where(t * lane_tile + col < d, xt, 0.0)

    @pl.when(j == 0)
    def _init():
        gram_ref[...] = jnp.zeros_like(gram_ref)

    gram_ref[...] += lax.dot_general(
        xt, xt, (((1,), (1,)), ((), ())),                 # X_tile @ X_tile^T
        preferred_element_type=jnp.float32,
        precision=lax.Precision.HIGHEST)[None]


# ----------------------------------------------------------------------------
# Kernel 2: Vt[:k] tile rebuilt from the raw inputs (no X read), running
# first-argmax(|.|) per row, optional fused sign flip on a resident output.
# ----------------------------------------------------------------------------
def _project_kernel(sv_ref, comp_ref, batch_ref, rmean_ref,
                    w1_ref, w2_ref, w3_ref, out_ref, *rest,
                    k, d, lane_tile, center, corr_scale, fuse_sign):
    if fuse_sign:
        best_abs, best_val = rest
        signs_ref = None
    else:
        signs_ref, best_abs, best_val = rest

    j = pl.program_id(0)
    last = pl.num_programs(0) - 1
    td = comp_ref.shape[1]

    @pl.when(j == 0)
    def _init():
        best_abs[...] = jnp.full_like(best_abs, -1.0)
        best_val[...] = jnp.zeros_like(best_val)
        if signs_ref is not None:
            signs_ref[...] = jnp.zeros_like(signs_ref)

    rmean = rmean_ref[...]
    batch = batch_ref[...]
    sv = sv_ref[...][:, 0:1]
    top = sv * comp_ref[...]                              # [k, TD]
    if center:
        batch_mean = jnp.mean(batch, axis=0, keepdims=True)
        mid = batch - batch_mean
        corr = corr_scale * (rmean - batch_mean)
    else:
        mid = batch
        corr = corr_scale * rmean

    # Vt tile = W @ X_tile with X never materialized:
    #   W[:, :k] @ top + W[:, k:k+n] @ mid + W[:, k+n] (outer) corr
    vt = (jnp.dot(w1_ref[...], top, preferred_element_type=jnp.float32,
                  precision=lax.Precision.HIGHEST)
          + jnp.dot(w2_ref[...], mid, preferred_element_type=jnp.float32,
                    precision=lax.Precision.HIGHEST)
          + w3_ref[...] * corr)                           # [k, TD]

    abs_vt = jnp.abs(vt)
    col = lax.broadcasted_iota(jnp.int32, (k, td), 1)
    if d % lane_tile != 0:
        abs_vt = jnp.where(j * lane_tile + col < d, abs_vt, -1.0)

    loc_max = jnp.max(abs_vt, axis=1, keepdims=True)      # [k, 1]
    masked_col = jnp.where(abs_vt == loc_max, col, td)
    first_col = jnp.min(masked_col, axis=1, keepdims=True)  # first in-tile argmax
    picked = jnp.sum(jnp.where(col == first_col, vt, 0.0), axis=1, keepdims=True)

    # Tiles are visited in order (single 'arbitrary' axis); strict '>' keeps the
    # earliest tile on ties -> global "first maximum" semantics.
    take = loc_max > best_abs[...]
    best_abs[...] = jnp.where(take, loc_max, best_abs[...])
    best_val[...] = jnp.where(take, picked, best_val[...])

    if fuse_sign:
        # Resident (k, d) VMEM output: store the unsigned tile now, apply the
        # sign once after the last tile, single HBM writeback.
        nt = (d + lane_tile - 1) // lane_tile
        rem = d - (nt - 1) * lane_tile                    # static last-tile width
        start = pl.multiple_of(j * lane_tile, lane_tile)
        if rem == lane_tile:
            out_ref[:, pl.ds(start, lane_tile)] = vt
        else:
            @pl.when(j < last)
            def _store_full():
                out_ref[:, pl.ds(start, lane_tile)] = vt

            @pl.when(j == last)
            def _store_part():
                out_ref[:, pl.ds(start, rem)] = vt[:, :rem]

        @pl.when(j == last)
        def _apply_sign():
            out_ref[...] = out_ref[...] * jnp.sign(best_val[...])
    else:
        out_ref[...] = vt
        @pl.when(j == last)
        def _emit_signs():
            signs_ref[...] = jnp.sign(best_val[...])


# ----------------------------------------------------------------------------
# Kernel 3 (fallback for very large k*d): apply the deterministic sign flip.
# ----------------------------------------------------------------------------
def _apply_sign_kernel(signs_ref, vt_ref, out_ref):
    out_ref[...] = vt_ref[...] * signs_ref[...]


# ----------------------------------------------------------------------------
# Wrapper
# ----------------------------------------------------------------------------
def ipca_forward(batch_inputs, running_mean, components, singular_vals,
                 n_samples, n_components, center=False, lane_tile=None,
                 fuse_sign_bytes=8 * 1024 * 1024):
    """Pallas implementation of IncrementalPCA.forward.

    Returns (noise_variance, new_state_dict)."""
    batch_inputs = batch_inputs.astype(jnp.float32)
    running_mean = running_mean.astype(jnp.float32)
    components = components.astype(jnp.float32)
    singular_vals = singular_vals.astype(jnp.float32)

    n_batch, d = batch_inputs.shape
    k = n_components
    rows = k + n_batch + 1
    rows_p = ((rows + 7) // 8) * 8              # sublane-aligned in-kernel X/Gram
    n_total = n_samples + n_batch
    m = min(rows, d)

    td = _pick_lane_tile(rows_p, d) if lane_tile is None else min(lane_tile, d)
    num_tiles = pl.cdiv(d, td)
    # v7x: split the feature axis across the 2 TensorCores when it divides
    # evenly; the Gram is a pure sum, so sign semantics are unaffected.
    split = (num_tiles >= 2) and (num_tiles % 2 == 0)
    half = num_tiles // 2 if split else num_tiles
    n_chunks = 2 if split else 1

    corr_scale = float(np.sqrt(n_samples * n_batch / n_total))
    sv_lane = jnp.broadcast_to(singular_vals[:, None], (k, 128))   # lane-dense
    rmean2d = running_mean.reshape(1, d)

    # --- K1: Gram (+ running mean) ------------------------------------------
    if split:
        tile_map = lambda c, j: (0, c * half + j)
        const_map = lambda c, j: (0, 0)
        gram_map = lambda c, j: (c, 0, 0)
        grid = (2, half)
        dims = ("parallel", "arbitrary")
    else:
        tile_map = lambda j: (0, j)
        const_map = lambda j: (0, 0)
        gram_map = lambda j: (0, 0, 0)
        grid = (num_tiles,)
        dims = ("arbitrary",)

    build = functools.partial(
        _build_gram_kernel, k=k, n=n_batch, rows_p=rows_p, d=d, lane_tile=td,
        half=half, split=split, n_samples=float(n_samples),
        n_batch=float(n_batch), n_total=float(n_total), center=center,
        corr_scale=corr_scale)

    out_shape = [jax.ShapeDtypeStruct((n_chunks, rows_p, rows_p), jnp.float32)]
    out_specs = [pl.BlockSpec((1, rows_p, rows_p), gram_map)]
    if center:
        out_shape.append(jax.ShapeDtypeStruct((1, d), jnp.float32))
        out_specs.append(pl.BlockSpec((1, td), tile_map))

    outs = pl.pallas_call(
        build,
        grid=grid,
        in_specs=[
            pl.BlockSpec((k, 128), const_map),             # singular_vals (lane-dense)
            pl.BlockSpec((k, td), tile_map),               # components
            pl.BlockSpec((n_batch, td), tile_map),         # batch
            pl.BlockSpec((1, td), tile_map),               # running mean
        ],
        out_specs=tuple(out_specs),
        out_shape=tuple(out_shape),
        scratch_shapes=[pltpu.VMEM((rows_p, td), jnp.float32)],   # X tile (VMEM only)
        compiler_params=pltpu.CompilerParams(
            dimension_semantics=dims,
            vmem_limit_bytes=_VMEM_LIMIT),
    )(sv_lane, components, batch_inputs, rmean2d)

    gram = outs[0].sum(axis=0)[:rows, :rows]
    new_mean = outs[1].reshape(d) if center else running_mean

    # TODO(synk): eigh/SVD has no Pallas primitive; the [rows, rows] eigh is tiny.
    evals, evecs = jnp.linalg.eigh(gram)                   # ascending
    evals = evals[::-1]
    evecs = evecs[:, ::-1]
    s2 = jnp.maximum(evals[:m], 0.0)                       # = S**2
    s_top = jnp.sqrt(s2[:k])
    safe_s = jnp.where(s_top > 0, s_top, 1.0)
    w = (evecs[:, :k] / safe_s[None, :]).T                 # [k, rows]; Vt[:k] = w @ X
    w1 = w[:, :k]                                          # [k, k]
    w2 = w[:, k:k + n_batch]                               # [k, n]
    w3 = w[:, k + n_batch:k + n_batch + 1]                 # [k, 1]

    explained = s2 / float(n_total - 1)
    noise = jnp.mean(explained[k:])                        # NaN if m == k (matches ref)

    # --- K2 (+ fused sign) ----------------------------------------------------
    fuse = (k * d * 4) <= fuse_sign_bytes
    proj = functools.partial(
        _project_kernel, k=k, d=d, lane_tile=td, center=center,
        corr_scale=corr_scale, fuse_sign=fuse)

    proj_in_specs = [
        pl.BlockSpec((k, 128), lambda j: (0, 0)),
        pl.BlockSpec((k, td), lambda j: (0, j)),
        pl.BlockSpec((n_batch, td), lambda j: (0, j)),
        pl.BlockSpec((1, td), lambda j: (0, j)),
        pl.BlockSpec((k, k), lambda j: (0, 0)),
        pl.BlockSpec((k, n_batch), lambda j: (0, 0)),
        pl.BlockSpec((k, 1), lambda j: (0, 0)),
    ]
    proj_args = (sv_lane, components, batch_inputs, rmean2d, w1, w2, w3)
    proj_scratch = [pltpu.VMEM((k, 1), jnp.float32),       # running best |.|
                    pltpu.VMEM((k, 1), jnp.float32)]       # value at that index

    if fuse:
        new_components = pl.pallas_call(
            proj,
            grid=(num_tiles,),
            in_specs=proj_in_specs,
            out_specs=pl.BlockSpec((k, d), lambda j: (0, 0)),   # resident, sign fused
            out_shape=jax.ShapeDtypeStruct((k, d), jnp.float32),
            scratch_shapes=proj_scratch,
            compiler_params=pltpu.CompilerParams(
                dimension_semantics=("arbitrary",),
                vmem_limit_bytes=_VMEM_LIMIT),
        )(*proj_args)
    else:
        vt_raw, signs = pl.pallas_call(
            proj,
            grid=(num_tiles,),
            in_specs=proj_in_specs,
            out_specs=(pl.BlockSpec((k, td), lambda j: (0, j)),
                       pl.BlockSpec((k, 1), lambda j: (0, 0))),
            out_shape=(jax.ShapeDtypeStruct((k, d), jnp.float32),
                       jax.ShapeDtypeStruct((k, 1), jnp.float32)),
            scratch_shapes=proj_scratch,
            compiler_params=pltpu.CompilerParams(
                dimension_semantics=("arbitrary",),
                vmem_limit_bytes=_VMEM_LIMIT),
        )(*proj_args)

        new_components = pl.pallas_call(
            _apply_sign_kernel,
            grid=(num_tiles,),
            in_specs=[
                pl.BlockSpec((k, 1), lambda j: (0, 0)),
                pl.BlockSpec((k, td), lambda j: (0, j)),
            ],
            out_specs=pl.BlockSpec((k, td), lambda j: (0, j)),
            out_shape=jax.ShapeDtypeStruct((k, d), jnp.float32),
            compiler_params=pltpu.CompilerParams(
                dimension_semantics=("parallel",)),
        )(signs, vt_raw)

    new_state = {
        "n_samples": n_total,
        "running_mean": new_mean,
        "components": new_components,
        "singular_vals": s_top,
    }
    return noise, new_state


def ipca_forward_ref(batch_inputs, running_mean, components, singular_vals,
                     n_samples, n_components, center=False):
    """Pure-JAX reference mirroring the PyTorch forward (SVD based)."""
    n_batch, feature_dim = batch_inputs.shape
    n_total = n_samples + n_batch
    batch_mean = jnp.zeros_like(running_mean)
    mean = batch_mean
    if center:
        batch_mean = batch_inputs.mean(axis=0)
        mean = (n_samples * running_mean + n_batch * batch_mean) / n_total
    mean_correction = np.sqrt(n_samples * n_batch / n_total) * (running_mean - batch_mean)
    X = jnp.concatenate(
        [singular_vals[:, None] * components,
         batch_inputs - batch_mean[None, :],
         mean_correction[None, :]], axis=0)
    _, S, Vt = jnp.linalg.svd(X, full_matrices=False)
    idx = jnp.argmax(jnp.abs(Vt), axis=1)
    signs = jnp.sign(Vt[jnp.arange(Vt.shape[0]), idx])
    Vt = Vt * signs[:, None]
    explained_variance = S ** 2 / (n_total - 1)
    noise_variance = explained_variance[n_components:].mean()
    return noise_variance, mean, Vt[:n_components, :], S[:n_components]


if __name__ == "__main__":
    key = jax.random.PRNGKey(0)
    k1, k2, k3, k4 = jax.random.split(key, 4)

    # ---- Case 1: fresh module state (matches __init__), center=False --------
    # num_tiles=2 -> exercises the 2-TC 'parallel' feature split + fused sign.
    feature_dim, n_components, n_batch = 256, 8, 16
    running_mean = jnp.zeros((feature_dim,), jnp.float32)
    components = jnp.zeros((n_components, feature_dim), jnp.float32)
    singular_vals = jax.random.normal(k1, (n_components,), jnp.float32)
    batch = jax.random.normal(k2, (n_batch, feature_dim), jnp.float32)

    noise, state = ipca_forward(batch, running_mean, components, singular_vals,
                                n_samples=0, n_components=n_components,
                                center=False, lane_tile=128)
    noise = jax.block_until_ready(noise)
    jax.block_until_ready(state["components"])

    noise_r, _, comp_r, sv_r = ipca_forward_ref(
        batch, running_mean, components, singular_vals, 0, n_components, False)
    np.testing.assert_allclose(np.asarray(noise), np.asarray(noise_r),
                               rtol=2e-4, atol=1e-5)
    np.testing.assert_allclose(np.asarray(state["singular_vals"]),
                               np.asarray(sv_r), rtol=2e-4, atol=1e-5)
    np.testing.assert_allclose(np.asarray(state["components"]),
                               np.asarray(comp_r), rtol=5e-3, atol=5e-4)

    # ---- Case 2: warm state, center=True, non-multiple-of-128 feature dim ---
    # (partial-lane-tile masking + running-mean path + 2-TC split + fused sign)
    fd2, k2_, nb2, ns2 = 192, 8, 16, 64
    rmean2 = jax.random.normal(k3, (fd2,), jnp.float32)
    comp2 = jax.random.normal(k4, (k2_, fd2), jnp.float32) / np.sqrt(fd2)
    sv2 = (jnp.arange(k2_, dtype=jnp.float32) + 2.0) * np.sqrt(fd2)
    batch2 = jax.random.normal(jax.random.fold_in(key, 7), (nb2, fd2), jnp.float32)

    noise2, state2 = ipca_forward(batch2, rmean2, comp2, sv2,
                                  n_samples=ns2, n_components=k2_,
                                  center=True, lane_tile=128)
    noise2 = jax.block_until_ready(noise2)
    jax.block_until_ready(state2["components"])

    noise2_r, mean2_r, comp2_r, sv2_r = ipca_forward_ref(
        batch2, rmean2, comp2, sv2, ns2, k2_, True)
    np.testing.assert_allclose(np.asarray(noise2), np.asarray(noise2_r),
                               rtol=2e-4, atol=1e-5)
    np.testing.assert_allclose(np.asarray(state2["running_mean"]),
                               np.asarray(mean2_r), rtol=1e-5, atol=1e-5)
    np.testing.assert_allclose(np.asarray(state2["singular_vals"]),
                               np.asarray(sv2_r), rtol=2e-4, atol=1e-5)
    np.testing.assert_allclose(np.asarray(state2["components"]),
                               np.asarray(comp2_r), rtol=5e-3, atol=5e-4)

    # ---- Case 3: default (large) lane tile, single tile, non-fused fallback -
    noise3, state3 = ipca_forward(batch, running_mean, components, singular_vals,
                                  n_samples=0, n_components=n_components,
                                  center=False, lane_tile=None,
                                  fuse_sign_bytes=0)      # force Vt+signs+K3 path
    noise3 = jax.block_until_ready(noise3)
    jax.block_until_ready(state3["components"])
    np.testing.assert_allclose(np.asarray(noise3), np.asarray(noise_r),
                               rtol=2e-4, atol=1e-5)
    np.testing.assert_allclose(np.asarray(state3["singular_vals"]),
                               np.asarray(sv_r), rtol=2e-4, atol=1e-5)
    np.testing.assert_allclose(np.asarray(state3["components"]),
                               np.asarray(comp_r), rtol=5e-3, atol=5e-4)

    print("KERNEL_OK")
</pallas_src>

<mosaic_0001>
module attributes {stable_mosaic.version = 11 : i64} {
  func.func @_build_gram_kernel(%arg0: i32, %arg1: i32, %arg2: memref<8x128xf32, #tpu.memory_space<vmem>>, %arg3: memref<8x128xf32, #tpu.memory_space<vmem>>, %arg4: memref<16x128xf32, #tpu.memory_space<vmem>>, %arg5: memref<1x128xf32, #tpu.memory_space<vmem>>, %arg6: memref<1x32x32xf32, #tpu.memory_space<vmem>>, %arg7: memref<32x128xf32, #tpu.memory_space<vmem>>) attributes {dimension_semantics = [#tpu.dimension_semantics<parallel>, #tpu.dimension_semantics<arbitrary>], iteration_bounds = array<i64: 2, 1>, scalar_prefetch = 0 : i64, scratch_operands = 1 : i64, tpu.core_type = #tpu.core_type<tc>, window_params = [{pipeline_mode = #tpu.pipeline_mode<synchronous>, transform_indices = @transform_0, window_bounds = array<i64: 8, 128>}, {transform_indices = @transform_1, window_bounds = array<i64: 8, 128>}, {transform_indices = @transform_2, window_bounds = array<i64: 16, 128>}, {transform_indices = @transform_3, window_bounds = array<i64: 1, 128>}, {transform_indices = @transform_4, window_bounds = array<i64: 1, 32, 32>}]} {
    %c0 = arith.constant 0 : index
    %c0_0 = arith.constant 0 : index
    %0 = vector.load %arg5[%c0, %c0_0] : memref<1x128xf32, #tpu.memory_space<vmem>>, vector<1x128xf32>
    %c0_1 = arith.constant 0 : index
    %c0_2 = arith.constant 0 : index
    %1 = vector.load %arg4[%c0_1, %c0_2] : memref<16x128xf32, #tpu.memory_space<vmem>>, vector<16x128xf32>
    %c0_3 = arith.constant 0 : index
    %c0_4 = arith.constant 0 : index
    %2 = vector.load %arg2[%c0_3, %c0_4] : memref<8x128xf32, #tpu.memory_space<vmem>>, vector<8x128xf32>
    %3 = vector.extract_strided_slice %2 {offsets = [0, 0], sizes = [8, 1], strides = [1, 1]} : vector<8x128xf32> to vector<8x1xf32>
    %c0_5 = arith.constant 0 : index
    %c0_6 = arith.constant 0 : index
    %4 = vector.load %arg3[%c0_5, %c0_6] : memref<8x128xf32, #tpu.memory_space<vmem>>, vector<8x128xf32>
    %5 = vector.broadcast %3 : vector<8x1xf32> to vector<8x128xf32>
    %6 = arith.mulf %5, %4 : vector<8x128xf32>
    %c0_7 = arith.constant 0 : index
    %c0_8 = arith.constant 0 : index
    %7 = vector.load %arg7[%c0_7, %c0_8] : memref<32x128xf32, #tpu.memory_space<vmem>>, vector<8x128xf32>
    tpu.vector_store %arg7[%c0_7, %c0_8], %6 {strides = array<i32>} : memref<32x128xf32, #tpu.memory_space<vmem>>, vector<8x128xf32>,
    %c8 = arith.constant 8 : index
    %c0_9 = arith.constant 0 : index
    %8 = vector.load %arg7[%c8, %c0_9] : memref<32x128xf32, #tpu.memory_space<vmem>>, vector<16x128xf32>
    tpu.vector_store %arg7[%c8, %c0_9], %1 {strides = array<i32>} : memref<32x128xf32, #tpu.memory_space<vmem>>, vector<16x128xf32>,
    %cst = arith.constant 0.000000e+00 : f32
    %9 = vector.broadcast %cst : f32 to vector<1x128xf32>
    %10 = arith.mulf %9, %0 : vector<1x128xf32>
    %c24 = arith.constant 24 : index
    %c0_10 = arith.constant 0 : index
    %11 = vector.load %arg7[%c24, %c0_10] : memref<32x128xf32, #tpu.memory_space<vmem>>, vector<1x128xf32>
    tpu.vector_store %arg7[%c24, %c0_10], %10 {strides = array<i32>} : memref<32x128xf32, #tpu.memory_space<vmem>>, vector<1x128xf32>,
    %cst_11 = arith.constant 0.000000e+00 : f32
    %12 = vector.broadcast %cst_11 : f32 to vector<7x128xf32>
    %c25 = arith.constant 25 : index
    %c0_12 = arith.constant 0 : index
    %13 = vector.load %arg7[%c25, %c0_12] : memref<32x128xf32, #tpu.memory_space<vmem>>, vector<7x128xf32>
    tpu.vector_store %arg7[%c25, %c0_12], %12 {strides = array<i32>} : memref<32x128xf32, #tpu.memory_space<vmem>>, vector<7x128xf32>,
    %c0_13 = arith.constant 0 : index
    %c0_14 = arith.constant 0 : index
    %14 = vector.load %arg7[%c0_13, %c0_14] : memref<32x128xf32, #tpu.memory_space<vmem>>, vector<32x128xf32>
    %c0_i32 = arith.constant 0 : i32
    %15 = arith.cmpi eq, %arg1, %c0_i32 : i32
    %16 = arith.extui %15 : i1 to i32
    %c0_i32_15 = arith.constant 0 : i32
    %17 = arith.cmpi ne, %16, %c0_i32_15 : i32
    scf.if %17 {
      %cst_23 = arith.constant 0.000000e+00 : f32
      %23 = vector.broadcast %cst_23 : f32 to vector<1x32x32xf32>
      %c0_24 = arith.constant 0 : index
      %c0_25 = arith.constant 0 : index
      %c0_26 = arith.constant 0 : index
      %24 = vector.load %arg6[%c0_24, %c0_25, %c0_26] : memref<1x32x32xf32, #tpu.memory_space<vmem>>, vector<1x32x32xf32>
      tpu.vector_store %arg6[%c0_24, %c0_25, %c0_26], %23 {strides = array<i32>} : memref<1x32x32xf32, #tpu.memory_space<vmem>>, vector<1x32x32xf32>,
    } else {
    }
    %c0_16 = arith.constant 0 : index
    %c0_17 = arith.constant 0 : index
    %c0_18 = arith.constant 0 : index
    %18 = vector.load %arg6[%c0_16, %c0_17, %c0_18] : memref<1x32x32xf32, #tpu.memory_space<vmem>>, vector<1x32x32xf32>
    %cst_19 = arith.constant dense<0.000000e+00> : vector<32x32xf32>
    %19 = tpu.matmul %14, %14, %cst_19 {dimension_numbers = #tpu.dot_dimension_numbers<[1], [1], [0], [0], [0, 0, 1, 0], [], []>, precision = #tpu.contract_precision<fp32>} : vector<32x128xf32>, vector<32x128xf32>, vector<32x32xf32> -> vector<32x32xf32>
    %20 = vector.shape_cast %19 : vector<32x32xf32> to vector<1x32x32xf32>
    %21 = arith.addf %18, %20 : vector<1x32x32xf32>
    %c0_20 = arith.constant 0 : index
    %c0_21 = arith.constant 0 : index
    %c0_22 = arith.constant 0 : index
    %22 = vector.load %arg6[%c0_20, %c0_21, %c0_22] : memref<1x32x32xf32, #tpu.memory_space<vmem>>, vector<1x32x32xf32>
    tpu.vector_store %arg6[%c0_20, %c0_21, %c0_22], %21 {strides = array<i32>} : memref<1x32x32xf32, #tpu.memory_space<vmem>>, vector<1x32x32xf32>,
    return
  }
  func.func @transform_0(%arg0: i32, %arg1: i32) -> (i32, i32) {
    %c0_i32 = arith.constant 0 : i32
    %c0_i32_0 = arith.constant 0 : i32
    %c0_i32_1 = arith.constant 0 : i32
    return %c0_i32, %c0_i32_0 : i32, i32
  }
  func.func @transform_1(%arg0: i32, %arg1: i32) -> (i32, i32) {
    %c1_i32 = arith.constant 1 : i32
    %0 = arith.muli %arg0, %c1_i32 : i32
    %1 = arith.addi %0, %arg1 : i32
    %c0_i32 = arith.constant 0 : i32
    %c0_i32_0 = arith.constant 0 : i32
    return %c0_i32, %1 : i32, i32
  }
  func.func @transform_2(%arg0: i32, %arg1: i32) -> (i32, i32) {
    %c1_i32 = arith.constant 1 : i32
    %0 = arith.muli %arg0, %c1_i32 : i32
    %1 = arith.addi %0, %arg1 : i32
    %c0_i32 = arith.constant 0 : i32
    %c0_i32_0 = arith.constant 0 : i32
    return %c0_i32, %1 : i32, i32
  }
  func.func @transform_3(%arg0: i32, %arg1: i32) -> (i32, i32) {
    %c1_i32 = arith.constant 1 : i32
    %0 = arith.muli %arg0, %c1_i32 : i32
    %1 = arith.addi %0, %arg1 : i32
    %c0_i32 = arith.constant 0 : i32
    %c0_i32_0 = arith.constant 0 : i32
    return %c0_i32, %1 : i32, i32
  }
  func.func @transform_4(%arg0: i32, %arg1: i32) -> (i32, i32, i32) {
    %c0_i32 = arith.constant 0 : i32
    %c0_i32_0 = arith.constant 0 : i32
    %c0_i32_1 = arith.constant 0 : i32
    return %arg0, %c0_i32, %c0_i32_0 : i32, i32, i32
  }
}

</mosaic_0001>

<llo_original>
// kernel: tpu_custom_call.1
$region0: #{tpu_custom_call.1}
  #allocation0 [shape = 'u32[]', space=smem, size = 0x4, offset = 0x4, fixed_abs, tag = 'smem constant byte address 0x4 - core index']
  #allocation1 [shape = 'u32[72,128]{1,0:T(1,128)}', space=vmem, size = 0x9000, scoped, tag = 'internal scratch']
  #allocation2 [shape = 'f32[32,128]{1,0:T(8,128)}', space=vmem, size = 0x4000, scoped, tag = 'scratch operand']
  %s0 = inlined_call_operand.hbm [shape: f32[8,128], index: 0, kind: input, shape index: {}]
  %s1 = inlined_call_operand.hbm [shape: f32[8,256], index: 1, kind: input, shape index: {}]
  %s2 = inlined_call_operand.hbm [shape: f32[16,256], index: 2, kind: input, shape index: {}]
  %s3 = inlined_call_operand.vmem [shape: f32[1,256], index: 3, kind: input, shape index: {}]
  %s4 = inlined_call_operand.hbm [shape: f32[2,32,32], index: 4, kind: output, shape index: {}]
  %s5 = sld [smem:[#allocation0]]
  $region65: #{tpu_custom_call.1} parent=0
    _
  %s7 = ssub.s32 1, %s5
  %s8 = scalar_select 0, %s7, %s5
  $region1: #{tpu_custom_call.1} parent=0
    #allocation3 [shape = 'u8[4096]{0}', space=vmem, size = 0x1000, scoped, tag = 'input window, operand 0, single buffered']
    #allocation4 [shape = 's32[2]{0}', space=sflag, size = 0x8, scoped, tag = 'scoped memory for tpu_custom_call.1']
    #allocation5 [shape = 's32[2]{0}', space=sflag, size = 0x8, scoped, tag = 'scoped memory for tpu_custom_call.1']
    #allocation6 [shape = 'u8[8192]{0}', space=vmem, size = 0x2000, scoped, tag = 'input window, operand 1']
    #allocation7 [shape = 's32[2]{0}', space=sflag, size = 0x8, scoped, tag = 'scoped memory for tpu_custom_call.1']
    #allocation8 [shape = 'u8[16384]{0}', space=vmem, size = 0x4000, scoped, tag = 'input window, operand 2']
    #allocation9 [shape = 'u8[32768]{0}', space=vmem, size = 0x8000, scoped, tag = 'output window, operand 0']
    %9 = vsyncpa [#allocation4], 0
    %10 = vsyncpa [#allocation7], 0
    %s11 = scalar_lea.sflag [#allocation7], 1
    %12 = vsyncpa %s11, 0
    %13 = vsyncpa [#allocation5], 0
    %s14 = scalar_lea.sflag [#allocation5], 1
    %15 = vsyncpa %s14, 0
    loop: start=0, step=1, limit=4
    $region2: #{tpu_custom_call.1} parent=1 // loop_pre_header
      _
    $region3: #{tpu_custom_call.1} parent=1 // loop_header
      %s17 = sphi 0, %s21
      %p18 = scmp.ge.s32.totalorder %s17, 4
      %s24 = sphi 0, %s36
      %s25 = sphi 0, %s32
      %s26 = sphi 0, %s24
      %s27 = sphi 0, %s25
      %s28 = sphi 0, %s26
      %s29 = sphi 0, %s27
      %s37 = sphi 0, %s37
      %s39 = sphi 0, %s37
      %s40 = sphi 0, %s39
      %s54 = sphi 0, %s40
      %s62 = sphi 0, %s64
      %s65 = sphi 0, %s62
      %s66 = sphi 0, %s65
      %s82 = sphi 0, %s66
      %s90 = sphi 0, %s92
      %s93 = sphi 0, %s90
      %s94 = sphi 0, %s93
      %s110 = sphi 0, %s94
      %s118 = sphi 0, %s120
      %s121 = sphi 0, %s118
      %s122 = sphi 0, %s121
      %s138 = sphi 0, %s122
      %s144 = sphi 0, %s146
      %s147 = sphi 0, %s144
      %s148 = sphi 0, %s147
      %s164 = sphi 0, %s148
    $region4: #{tpu_custom_call.1} parent=1 // loop_header_branch
      %20 = sbr.rel (%p18) target = $region8
    $region5: #{tpu_custom_call.1} parent=1 // loop_body
      %s22 = ssub.s32 %s17, 1
      %s23 = ssub.s32 %s17, 2
      %s30 = sadd.s32 1, %s25
      %p31 = scmp.ge.s32.totalorder %s30, 1
      %s32 = scalar_select %p31, 0, %s30
      %s33 = sadd.s32 1, %s24
      %s34 = scalar_select %p31, %s33, %s24
      %p35 = scmp.ge.s32.totalorder %s34, 2
      %s36 = scalar_select %p35, 0, %s34
      %s38 = sadd.s32 %s37, 1
      %p41 = scmp.eq.s32.totalorder %s17, 1
      %p42 = scmp.ne.s32.totalorder %s37, %s39
      %p43 = scmp.eq.s32.totalorder %s17, 0
      %p44 = por %p42, %p43
      %p45 = scmp.ne.s32.totalorder %s37, %s39
      %p46 = scmp.eq.s32.totalorder %s22, 1
      %p47 = por %p45, %p46
      %p48 = scmp.ne.s32.totalorder %s39, %s40
      %p49 = scmp.eq.s32.totalorder %s22, 0
      %p50 = por %p48, %p49
      %p51 = scmp.ne.s32.totalorder %s39, %s40
      %p52 = scmp.eq.s32.totalorder %s23, 1
      %p53 = por %p51, %p52
      %p55 = scmp.ne.s32.totalorder %s40, %s54
      %p56 = scmp.eq.s32.totalorder %s23, 0
      %p57 = por %p55, %p56
      %s58 = sadd.s32 %s24, %s25
      %s59 = sadd.s32 %s36, %s32
      %s60 = ssub.s32 %s58, %s59
      %p61 = scmp.eq.s32.totalorder %s60, 0
      %s63 = sadd.s32 %s62, 1
      %s64 = scalar_select %p61, %s62, %s63
      %p67 = pneg %p61
      %p68 = scmp.eq.s32.totalorder %s17, 1
      %p69 = por %p67, %p68
      %p70 = scmp.ne.s32.totalorder %s62, %s65
      %p71 = scmp.eq.s32.totalorder %s17, 0
      %p72 = por %p70, %p71
      %p73 = scmp.ne.s32.totalorder %s62, %s65
      %p74 = scmp.eq.s32.totalorder %s22, 1
      %p75 = por %p73, %p74
      %p76 = scmp.ne.s32.totalorder %s65, %s66
      %p77 = scmp.eq.s32.totalorder %s22, 0
      %p78 = por %p76, %p77
      %p79 = scmp.ne.s32.totalorder %s65, %s66
      %p80 = scmp.eq.s32.totalorder %s23, 1
      %p81 = por %p79, %p80
      %p83 = scmp.ne.s32.totalorder %s66, %s82
      %p84 = scmp.eq.s32.totalorder %s23, 0
      %p85 = por %p83, %p84
      %s86 = sadd.s32 %s24, %s25
      %s87 = sadd.s32 %s36, %s32
      %s88 = ssub.s32 %s86, %s87
      %p89 = scmp.eq.s32.totalorder %s88, 0
      %s91 = sadd.s32 %s90, 1
      %s92 = scalar_select %p89, %s90, %s91
      %p95 = pneg %p89
      %p96 = scmp.eq.s32.totalorder %s17, 1
      %p97 = por %p95, %p96
      %p98 = scmp.ne.s32.totalorder %s90, %s93
      %p99 = scmp.eq.s32.totalorder %s17, 0
      %p100 = por %p98, %p99
      %p101 = scmp.ne.s32.totalorder %s90, %s93
      %p102 = scmp.eq.s32.totalorder %s22, 1
      %p103 = por %p101, %p102
      %p104 = scmp.ne.s32.totalorder %s93, %s94
      %p105 = scmp.eq.s32.totalorder %s22, 0
      %p106 = por %p104, %p105
      %p107 = scmp.ne.s32.totalorder %s93, %s94
      %p108 = scmp.eq.s32.totalorder %s23, 1
      %p109 = por %p107, %p108
      %p111 = scmp.ne.s32.totalorder %s94, %s110
      %p112 = scmp.eq.s32.totalorder %s23, 0
      %p113 = por %p111, %p112
      %s114 = sadd.s32 %s24, %s25
      %s115 = sadd.s32 %s36, %s32
      %s116 = ssub.s32 %s114, %s115
      %p117 = scmp.eq.s32.totalorder %s116, 0
      %s119 = sadd.s32 %s118, 1
      %s120 = scalar_select %p117, %s118, %s119
      %p123 = pneg %p117
      %p124 = scmp.eq.s32.totalorder %s17, 1
      %p125 = por %p123, %p124
      %p126 = scmp.ne.s32.totalorder %s118, %s121
      %p127 = scmp.eq.s32.totalorder %s17, 0
      %p128 = por %p126, %p127
      %p129 = scmp.ne.s32.totalorder %s118, %s121
      %p130 = scmp.eq.s32.totalorder %s22, 1
      %p131 = por %p129, %p130
      %p132 = scmp.ne.s32.totalorder %s121, %s122
      %p133 = scmp.eq.s32.totalorder %s22, 0
      %p134 = por %p132, %p133
      %p135 = scmp.ne.s32.totalorder %s121, %s122
      %p136 = scmp.eq.s32.totalorder %s23, 1
      %p137 = por %p135, %p136
      %p139 = scmp.ne.s32.totalorder %s122, %s138
      %p140 = scmp.eq.s32.totalorder %s23, 0
      %p141 = por %p139, %p140
      %s142 = ssub.s32 %s24, %s36
      %p143 = scmp.eq.s32.totalorder %s142, 0
      %s145 = sadd.s32 %s144, 1
      %s146 = scalar_select %p143, %s144, %s145
      %p149 = pneg %p143
      %p150 = scmp.eq.s32.totalorder %s17, 1
      %p151 = por %p149, %p150
      %p152 = scmp.ne.s32.totalorder %s144, %s147
      %p153 = scmp.eq.s32.totalorder %s17, 0
      %p154 = por %p152, %p153
      %p155 = scmp.ne.s32.totalorder %s144, %s147
      %p156 = scmp.eq.s32.totalorder %s22, 1
      %p157 = por %p155, %p156
      %p158 = scmp.ne.s32.totalorder %s147, %s148
      %p159 = scmp.eq.s32.totalorder %s22, 0
      %p160 = por %p158, %p159
      %p161 = scmp.ne.s32.totalorder %s147, %s148
      %p162 = scmp.eq.s32.totalorder %s23, 1
      %p163 = por %p161, %p162
      %p165 = scmp.ne.s32.totalorder %s148, %s164
      %p166 = scmp.eq.s32.totalorder %s23, 0
      %p167 = por %p165, %p166
      %p168 = scmp.le.s32.totalorder 1, %s17
      %p169 = scmp.lt.s32.totalorder %s17, 3
      %p170 = pnand %p168, %p169
      %p171 = pneg %p170
      // Predicated region
      $region9: #{tpu_custom_call.1} parent=5 // pred_check
        _
      $region10: #{tpu_custom_call.1} parent=5 // pred_check_branch
        %173 = sbr.rel (%p170) target = $region12
      $region11: #{tpu_custom_call.1} parent=5 // pred_region
        %s174 = ssub.s32 %s17, 1
        // Predicated region
        $region13: #{tpu_custom_call.1} parent=11 // pred_check
          %p175 = pneg %p50
        $region14: #{tpu_custom_call.1} parent=11 // pred_check_branch
          %177 = sbr.rel (%p175) target = $region16
        $region15: #{tpu_custom_call.1} parent=11 // pred_region
          %179 = vsyncadd [#allocation4], 0
          %s181 = sshll.u32 %s0, 4
          %s182 = int_to_ptr.hbm [resolvable:$true] %s181
          %s183 = sshll.u32 [#allocation3], 4
          %s184 = int_to_ptr.vmem [resolvable:$true] %s183
          %186 = dma.hbm_to_vmem [thread:$0]  %s182, 128, %s184, [#allocation4]
        $region16: #{tpu_custom_call.1} parent=11 // pred_fallthru
          _
      $region12: #{tpu_custom_call.1} parent=5 // pred_fallthru
        _
      %p187 = scmp.lt.s32.totalorder %s17, 2
      // Predicated region
      $region17: #{tpu_custom_call.1} parent=5 // pred_check
        %p188 = pneg %p187
      $region18: #{tpu_custom_call.1} parent=5 // pred_check_branch
        %190 = sbr.rel (%p188) target = $region20
      $region19: #{tpu_custom_call.1} parent=5 // pred_region
        // Predicated region
        $region21: #{tpu_custom_call.1} parent=19 // pred_check
          %p191 = pneg %p72
        $region22: #{tpu_custom_call.1} parent=19 // pred_check_branch
          %193 = sbr.rel (%p191) target = $region24
        $region23: #{tpu_custom_call.1} parent=19 // pred_region
          %s194 = sand.u32 %s17, 1
          %s195 = scalar_lea.sflag [#allocation7], %s194
          %s196 = sand.u32 %s62, 1
          %s197 = smul.addr %s196, 8
          %s198 = scalar_lea.vmem [#allocation6], %s197
          %s199 = sadd.s32 %s24, %s25
          %201 = vsyncadd %s195, 0
          %s202 = smul.addr %s199, 8
          %s203 = scalar_lea.hbm %s1, %s202
          %s205 = sshll.u32 %s203, 4
          %s206 = int_to_ptr.hbm [resolvable:$true] %s205
          %s207 = sshll.u32 %s198, 4
          %s208 = int_to_ptr.vmem [resolvable:$true] %s207
          %210 = dma.hbm_to_vmem [thread:$0]  %s206, 128, %s208, %s195
        $region24: #{tpu_custom_call.1} parent=19 // pred_fallthru
          _
        // Predicated region
        $region25: #{tpu_custom_call.1} parent=19 // pred_check
          %p211 = pneg %p100
        $region26: #{tpu_custom_call.1} parent=19 // pred_check_branch
          %213 = sbr.rel (%p211) target = $region28
        $region27: #{tpu_custom_call.1} parent=19 // pred_region
          %s214 = sand.u32 %s17, 1
          %s215 = scalar_lea.sflag [#allocation7], %s214
          %s216 = sand.u32 %s90, 1
          %s217 = smul.addr %s216, 16
          %s218 = scalar_lea.vmem [#allocation8], %s217
          %s219 = sadd.s32 %s24, %s25
          %221 = vsyncadd %s215, 0
          %s222 = smul.addr %s219, 8
          %s223 = scalar_lea.hbm %s2, %s222
          %s224 = sshll.u32 %s223, 4
          %s225 = int_to_ptr.hbm [resolvable:$true] %s224
          %s226 = sshll.u32 %s218, 4
          %s227 = int_to_ptr.vmem [resolvable:$true] %s226
          %232 = dma.hbm_to_vmem [thread:$0]  %s225, 256, %s227, %s215, 256, 128, 8
        $region28: #{tpu_custom_call.1} parent=19 // pred_fallthru
          _
        // Predicated region
        $region29: #{tpu_custom_call.1} parent=19 // pred_check
          %p233 = pneg %p128
        $region30: #{tpu_custom_call.1} parent=19 // pred_check_branch
          %235 = sbr.rel (%p233) target = $region32
        $region31: #{tpu_custom_call.1} parent=19 // pred_region
          %s236 = sadd.s32 %s24, %s25
          %p237 = scmp.lt.s32.totalorder %s236, 1
          %s238 = scalar_select %p237, %s236, 1
          %s239 = scalar_lea.vmem %s3, %s238
          %s240 = sadd.s32 %s24, %s25
        $region32: #{tpu_custom_call.1} parent=19 // pred_fallthru
          _
      $region20: #{tpu_custom_call.1} parent=5 // pred_fallthru
        _
      %p241 = scmp.le.s32.totalorder 1, %s17
      %p242 = scmp.lt.s32.totalorder %s17, 3
      %p243 = pnand %p241, %p242
      %p244 = pneg %p243
      // Predicated region
      $region33: #{tpu_custom_call.1} parent=5 // pred_check
        _
      $region34: #{tpu_custom_call.1} parent=5 // pred_check_branch
        %246 = sbr.rel (%p243) target = $region36
      $region35: #{tpu_custom_call.1} parent=5 // pred_region
        %s247 = ssub.s32 %s17, 1
        // Predicated region
        $region37: #{tpu_custom_call.1} parent=35 // pred_check
          %p248 = pneg %p50
        $region38: #{tpu_custom_call.1} parent=35 // pred_check_branch
          %250 = sbr.rel (%p248) target = $region40
        $region39: #{tpu_custom_call.1} parent=35 // pred_region
          %252 = dma.done [#allocation4], 128
        $region40: #{tpu_custom_call.1} parent=35 // pred_fallthru
          _
        %s253 = sand.u32 %s22, 1
        %s254 = scalar_lea.sflag [#allocation7], %s253
        %s255 = sand.u32 %s65, 1
        %s256 = smul.addr %s255, 8
        %s257 = scalar_lea.vmem [#allocation6], %s256
        // Predicated region
        $region41: #{tpu_custom_call.1} parent=35 // pred_check
          %p258 = pneg %p78
        $region42: #{tpu_custom_call.1} parent=35 // pred_check_branch
          %260 = sbr.rel (%p258) target = $region44
        $region43: #{tpu_custom_call.1} parent=35 // pred_region
          %262 = dma.done %s254, 128
        $region44: #{tpu_custom_call.1} parent=35 // pred_fallthru
          _
        %s263 = sand.u32 %s22, 1
        %s264 = scalar_lea.sflag [#allocation7], %s263
        %s265 = sand.u32 %s93, 1
        %s266 = smul.addr %s265, 16
        %s267 = scalar_lea.vmem [#allocation8], %s266
        // Predicated region
        $region45: #{tpu_custom_call.1} parent=35 // pred_check
          %p268 = pneg %p106
        $region46: #{tpu_custom_call.1} parent=35 // pred_check_branch
          %270 = sbr.rel (%p268) target = $region48
        $region47: #{tpu_custom_call.1} parent=35 // pred_region
          %272 = dma.done %s264, 256
        $region48: #{tpu_custom_call.1} parent=35 // pred_fallthru
          _
        %p273 = pneg %p50
        %p274 = pneg %p47
        %s275 = sand.u32 %s22, 1
        %s276 = scalar_lea.sflag [#allocation7], %s275
        %s277 = sand.u32 %s65, 1
        %s278 = smul.addr %s277, 8
        %s279 = scalar_lea.vmem [#allocation6], %s278
        %p280 = pneg %p78
        %p281 = pneg %p75
        %s282 = sand.u32 %s22, 1
        %s283 = scalar_lea.sflag [#allocation7], %s282
        %s284 = sand.u32 %s93, 1
        %s285 = smul.addr %s284, 16
        %s286 = scalar_lea.vmem [#allocation8], %s285
        %p287 = pneg %p106
        %p288 = pneg %p103
        %s289 = sadd.s32 %s26, %s27
        %p290 = scmp.lt.s32.totalorder %s289, 1
        %s291 = scalar_select %p290, %s289, 1
        %s292 = scalar_lea.vmem %s3, %s291
        %p293 = pneg %p134
        %p294 = pneg %p131
        %p295 = pneg %p160
        %p296 = pneg %p157
        %s297 = sand.u32 %s147, 1
        %s298 = scalar_lea.sflag [#allocation5], %s297
        %s299 = sand.u32 %s147, 1
        %s300 = smul.addr %s299, 32
        %s301 = scalar_lea.vmem [#allocation9], %s300
        %s302 = sadd.s32 %s26, %s27
        %s303 = sadd.s32 %s26, %s27
        %s304 = sadd.s32 %s26, %s27
        %p305 = scmp.lt.s32.totalorder %s304, 1
        %s306 = scalar_select %p305, %s304, 1
        %s307 = scalar_lea.vmem %s3, %s306
        %s308 = sadd.s32 %s26, %s27
        %v309 = vld [vmem:[%s307] sm:$0x1]
        %v310 = vld [vmem:[%s267] sm:$0xff]
        %v311 = vld [vmem:[%s267 + $0x8] sm:$0xff]
        %v312 = vld [vmem:[#allocation3] sm:$0xff]
        %v313 = vld [vmem:[%s257] sm:$0xff]
        %315 = vset.pattern.permute.xlu0 0
        %316 = vperm.xlu0 %315, %v312
        %v317 = vpop.permute.xlu0 %316
        %v319 = vmul.f32 %v317, %v313
        %320 = vst [vmem:[#allocation2] sm:$0xff] %v319
        %321 = vst [vmem:[#allocation2 + $0x8] sm:$0xff] %v310
        %322 = vst [vmem:[#allocation2 + $0x10] sm:$0xff] %v311
        %v323 = vmul.f32 %v309, 0.0
        %324 = vst [vmem:[#allocation2 + $0x18] sm:$0x1] %v323
        %325 = vst [vmem:[#allocation2 + $0x19] sm:$0x7f] 0.0
        %v326 = vld [vmem:[#allocation2] sm:$0xff]
        %v327 = vld [vmem:[#allocation2 + $0x8] sm:$0xff]
        %v328 = vld [vmem:[#allocation2 + $0x10] sm:$0xff]
        %v329 = vld [vmem:[#allocation2 + $0x18] sm:$0xff]
        %p330 = scmp.eq.s32.totalorder %s27, 0
        // Predicated region
        $region49: #{tpu_custom_call.1} parent=35 // pred_check
          %p331 = pneg %p330
        $region50: #{tpu_custom_call.1} parent=35 // pred_check_branch
          %333 = sbr.rel (%p331) target = $region52
        $region51: #{tpu_custom_call.1} parent=35 // pred_region
          %vm334 = vcmask 261120
          %335 = vst.msk [vmem:[%s301] sm:$0xff] %vm334, 0.0
          %336 = vst.msk [vmem:[%s301 + $0x8] sm:$0xff] %vm334, 0.0
          %337 = vst.msk [vmem:[%s301 + $0x10] sm:$0xff] %vm334, 0.0
          %338 = vst.msk [vmem:[%s301 + $0x18] sm:$0xff] %vm334, 0.0
        $region52: #{tpu_custom_call.1} parent=35 // pred_fallthru
          _
        %v339 = vld [vmem:[%s301] sm:$0xff]
        %v340 = vld [vmem:[%s301 + $0x8] sm:$0xff]
        %v341 = vld [vmem:[%s301 + $0x10] sm:$0xff]
        %v342 = vld [vmem:[%s301 + $0x18] sm:$0xff]
        %343 = vmatpush.xpose.msra.mxu0 0.0
        %344 = vmatpush.xpose.msra.mxu0 0.0
        %345 = vmatpush.xpose.msra.mxu0 0.0
        %346 = vmatpush.xpose.msra.mxu0 0.0
        %347 = vmatpush.xpose.msra.mxu0 0.0
        %348 = vmatpush.xpose.msra.mxu0 0.0
        %349 = vmatpush.xpose.msra.mxu0 0.0
        %350 = vmatpush.xpose.msra.mxu0 0.0
        %351 = vmatpush.xpose.msra.mxu0 0.0
        %352 = vmatpush.xpose.msra.mxu0 0.0
        %353 = vmatpush.xpose.msra.mxu0 0.0
        %354 = vmatpush.xpose.msra.mxu0 0.0
        %v355 = vand.u32 %v329, 4294901760
        %356 = vmatpush.xpose.msra.mxu0 %v355
        %v357 = vand.u32 %v328, 4294901760
        %358 = vmatpush.xpose.msra.mxu0 %v357
        %v359 = vand.u32 %v327, 4294901760
        %360 = vmatpush.xpose.msra.mxu0 %v359
        %v361 = vand.u32 %v326, 4294901760
        %362 = vmatpush.xpose.msra.mxu0 %v361
        %v363 = vand.u32 %v326, 4294901760
        %v364 = vsub.f32 %v326, %v363
        %v365 = vand.u32 %v364, 4294901760
        %v366 = vsub.f32 %v364, %v365
        %v367 = vand.u32 %v366, 4294901760
        %368 = vmatmul.f32.gmra.mxu0 %v367
        %v369 = vpop.f32.mrf.mxu0
        %v370 = vadd.f32 0.0, %v369
        %v371 = vand.u32 %v327, 4294901760
        %v372 = vsub.f32 %v327, %v371
        %v373 = vand.u32 %v372, 4294901760
        %v374 = vsub.f32 %v372, %v373
        %v375 = vand.u32 %v374, 4294901760
        %376 = vmatmul.f32.gmra.mxu0 %v375
        %v377 = vpop.f32.mrf.mxu0
        %v378 = vadd.f32 0.0, %v377
        %v379 = vand.u32 %v328, 4294901760
        %v380 = vsub.f32 %v328, %v379
        %v381 = vand.u32 %v380, 4294901760
        %v382 = vsub.f32 %v380, %v381
        %v383 = vand.u32 %v382, 4294901760
        %384 = vmatmul.f32.gmra.mxu0 %v383
        %v385 = vpop.f32.mrf.mxu0
        %v386 = vadd.f32 0.0, %v385
        %v387 = vand.u32 %v329, 4294901760
        %v388 = vsub.f32 %v329, %v387
        %v389 = vand.u32 %v388, 4294901760
        %v390 = vsub.f32 %v388, %v389
        %v391 = vand.u32 %v390, 4294901760
        %392 = vmatmul.f32.gmra.mxu0 %v391
        %v393 = vpop.f32.mrf.mxu0
        %v394 = vadd.f32 0.0, %v393
        %395 = vdwg.mxu0
        %396 = vmatpush.xpose.msra.mxu0 0.0
        %397 = vmatpush.xpose.msra.mxu0 0.0
        %398 = vmatpush.xpose.msra.mxu0 0.0
        %399 = vmatpush.xpose.msra.mxu0 0.0
        %400 = vmatpush.xpose.msra.mxu0 0.0
        %401 = vmatpush.xpose.msra.mxu0 0.0
        %402 = vmatpush.xpose.msra.mxu0 0.0
        %403 = vmatpush.xpose.msra.mxu0 0.0
        %404 = vmatpush.xpose.msra.mxu0 0.0
        %405 = vmatpush.xpose.msra.mxu0 0.0
        %406 = vmatpush.xpose.msra.mxu0 0.0
        %407 = vmatpush.xpose.msra.mxu0 0.0
        %v408 = vand.u32 %v329, 4294901760
        %v409 = vsub.f32 %v329, %v408
        %v410 = vand.u32 %v409, 4294901760
        %v411 = vsub.f32 %v409, %v410
        %v412 = vand.u32 %v411, 4294901760
        %413 = vmatpush.xpose.msra.mxu0 %v412
        %v414 = vand.u32 %v328, 4294901760
        %v415 = vsub.f32 %v328, %v414
        %v416 = vand.u32 %v415, 4294901760
        %v417 = vsub.f32 %v415, %v416
        %v418 = vand.u32 %v417, 4294901760
        %419 = vmatpush.xpose.msra.mxu0 %v418
        %v420 = vand.u32 %v327, 4294901760
        %v421 = vsub.f32 %v327, %v420
        %v422 = vand.u32 %v421, 4294901760
        %v423 = vsub.f32 %v421, %v422
        %v424 = vand.u32 %v423, 4294901760
        %425 = vmatpush.xpose.msra.mxu0 %v424
        %v426 = vand.u32 %v326, 4294901760
        %v427 = vsub.f32 %v326, %v426
        %v428 = vand.u32 %v427, 4294901760
        %v429 = vsub.f32 %v427, %v428
        %v430 = vand.u32 %v429, 4294901760
        %431 = vmatpush.xpose.msra.mxu0 %v430
        %v432 = vand.u32 %v326, 4294901760
        %433 = vmatmul.f32.gmra.mxu0 %v432
        %v434 = vpop.f32.mrf.mxu0
        %v435 = vadd.f32 %v370, %v434
        %v436 = vand.u32 %v327, 4294901760
        %437 = vmatmul.f32.gmra.mxu0 %v436
        %v438 = vpop.f32.mrf.mxu0
        %v439 = vadd.f32 %v378, %v438
        %v440 = vand.u32 %v328, 4294901760
        %441 = vmatmul.f32.gmra.mxu0 %v440
        %v442 = vpop.f32.mrf.mxu0
        %v443 = vadd.f32 %v386, %v442
        %v444 = vand.u32 %v329, 4294901760
        %445 = vmatmul.f32.gmra.mxu0 %v444
        %v446 = vpop.f32.mrf.mxu0
        %v447 = vadd.f32 %v394, %v446
        %448 = vdwg.mxu0
        %449 = vmatpush.xpose.msra.mxu0 0.0
        %450 = vmatpush.xpose.msra.mxu0 0.0
        %451 = vmatpush.xpose.msra.mxu0 0.0
        %452 = vmatpush.xpose.msra.mxu0 0.0
        %453 = vmatpush.xpose.msra.mxu0 0.0
        %454 = vmatpush.xpose.msra.mxu0 0.0
        %455 = vmatpush.xpose.msra.mxu0 0.0
        %456 = vmatpush.xpose.msra.mxu0 0.0
        %457 = vmatpush.xpose.msra.mxu0 0.0
        %458 = vmatpush.xpose.msra.mxu0 0.0
        %459 = vmatpush.xpose.msra.mxu0 0.0
        %460 = vmatpush.xpose.msra.mxu0 0.0
        %v461 = vand.u32 %v329, 4294901760
        %v462 = vsub.f32 %v329, %v461
        %463 = vmatpush.xpose.msra.mxu0 %v462
        %v464 = vand.u32 %v328, 4294901760
        %v465 = vsub.f32 %v328, %v464
        %466 = vmatpush.xpose.msra.mxu0 %v465
        %v467 = vand.u32 %v327, 4294901760
        %v468 = vsub.f32 %v327, %v467
        %469 = vmatpush.xpose.msra.mxu0 %v468
        %v470 = vand.u32 %v326, 4294901760
        %v471 = vsub.f32 %v326, %v470
        %472 = vmatpush.xpose.msra.mxu0 %v471
        %v473 = vand.u32 %v326, 4294901760
        %v474 = vsub.f32 %v326, %v473
        %475 = vmatmul.f32.gmra.mxu0 %v474
        %v476 = vpop.f32.mrf.mxu0
        %v477 = vadd.f32 %v435, %v476
        %v478 = vand.u32 %v327, 4294901760
        %v479 = vsub.f32 %v327, %v478
        %480 = vmatmul.f32.gmra.mxu0 %v479
        %v481 = vpop.f32.mrf.mxu0
        %v482 = vadd.f32 %v439, %v481
        %v483 = vand.u32 %v328, 4294901760
        %v484 = vsub.f32 %v328, %v483
        %485 = vmatmul.f32.gmra.mxu0 %v484
        %v486 = vpop.f32.mrf.mxu0
        %v487 = vadd.f32 %v443, %v486
        %v488 = vand.u32 %v329, 4294901760
        %v489 = vsub.f32 %v329, %v488
        %490 = vmatmul.f32.gmra.mxu0 %v489
        %v491 = vpop.f32.mrf.mxu0
        %v492 = vadd.f32 %v447, %v491
        %493 = vdwg.mxu0
        %494 = vmatpush.xpose.msra.mxu0 0.0
        %495 = vmatpush.xpose.msra.mxu0 0.0
        %496 = vmatpush.xpose.msra.mxu0 0.0
        %497 = vmatpush.xpose.msra.mxu0 0.0
        %498 = vmatpush.xpose.msra.mxu0 0.0
        %499 = vmatpush.xpose.msra.mxu0 0.0
        %500 = vmatpush.xpose.msra.mxu0 0.0
        %501 = vmatpush.xpose.msra.mxu0 0.0
        %502 = vmatpush.xpose.msra.mxu0 0.0
        %503 = vmatpush.xpose.msra.mxu0 0.0
        %504 = vmatpush.xpose.msra.mxu0 0.0
        %505 = vmatpush.xpose.msra.mxu0 0.0
        %v506 = vand.u32 %v329, 4294901760
        %507 = vmatpush.xpose.msra.mxu0 %v506
        %v508 = vand.u32 %v328, 4294901760
        %509 = vmatpush.xpose.msra.mxu0 %v508
        %v510 = vand.u32 %v327, 4294901760
        %511 = vmatpush.xpose.msra.mxu0 %v510
        %v512 = vand.u32 %v326, 4294901760
        %513 = vmatpush.xpose.msra.mxu0 %v512
        %v514 = vand.u32 %v326, 4294901760
        %v515 = vsub.f32 %v326, %v514
        %v516 = vand.u32 %v515, 4294901760
        %517 = vmatmul.f32.gmra.mxu0 %v516
        %v518 = vpop.f32.mrf.mxu0
        %v519 = vadd.f32 %v477, %v518
        %v520 = vand.u32 %v327, 4294901760
        %v521 = vsub.f32 %v327, %v520
        %v522 = vand.u32 %v521, 4294901760
        %523 = vmatmul.f32.gmra.mxu0 %v522
        %v524 = vpop.f32.mrf.mxu0
        %v525 = vadd.f32 %v482, %v524
        %v526 = vand.u32 %v328, 4294901760
        %v527 = vsub.f32 %v328, %v526
        %v528 = vand.u32 %v527, 4294901760
        %529 = vmatmul.f32.gmra.mxu0 %v528
        %v530 = vpop.f32.mrf.mxu0
        %v531 = vadd.f32 %v487, %v530
        %v532 = vand.u32 %v329, 4294901760
        %v533 = vsub.f32 %v329, %v532
        %v534 = vand.u32 %v533, 4294901760
        %535 = vmatmul.f32.gmra.mxu0 %v534
        %v536 = vpop.f32.mrf.mxu0
        %v537 = vadd.f32 %v492, %v536
        %538 = vdwg.mxu0
        %539 = vmatpush.xpose.msra.mxu0 0.0
        %540 = vmatpush.xpose.msra.mxu0 0.0
        %541 = vmatpush.xpose.msra.mxu0 0.0
        %542 = vmatpush.xpose.msra.mxu0 0.0
        %543 = vmatpush.xpose.msra.mxu0 0.0
        %544 = vmatpush.xpose.msra.mxu0 0.0
        %545 = vmatpush.xpose.msra.mxu0 0.0
        %546 = vmatpush.xpose.msra.mxu0 0.0
        %547 = vmatpush.xpose.msra.mxu0 0.0
        %548 = vmatpush.xpose.msra.mxu0 0.0
        %549 = vmatpush.xpose.msra.mxu0 0.0
        %550 = vmatpush.xpose.msra.mxu0 0.0
        %v551 = vand.u32 %v329, 4294901760
        %v552 = vsub.f32 %v329, %v551
        %v553 = vand.u32 %v552, 4294901760
        %554 = vmatpush.xpose.msra.mxu0 %v553
        %v555 = vand.u32 %v328, 4294901760
        %v556 = vsub.f32 %v328, %v555
        %v557 = vand.u32 %v556, 4294901760
        %558 = vmatpush.xpose.msra.mxu0 %v557
        %v559 = vand.u32 %v327, 4294901760
        %v560 = vsub.f32 %v327, %v559
        %v561 = vand.u32 %v560, 4294901760
        %562 = vmatpush.xpose.msra.mxu0 %v561
        %v563 = vand.u32 %v326, 4294901760
        %v564 = vsub.f32 %v326, %v563
        %v565 = vand.u32 %v564, 4294901760
        %566 = vmatpush.xpose.msra.mxu0 %v565
        %v567 = vand.u32 %v326, 4294901760
        %568 = vmatmul.f32.gmra.mxu0 %v567
        %v569 = vpop.f32.mrf.mxu0
        %v570 = vadd.f32 %v519, %v569
        %v571 = vand.u32 %v327, 4294901760
        %572 = vmatmul.f32.gmra.mxu0 %v571
        %v573 = vpop.f32.mrf.mxu0
        %v574 = vadd.f32 %v525, %v573
        %v575 = vand.u32 %v328, 4294901760
        %576 = vmatmul.f32.gmra.mxu0 %v575
        %v577 = vpop.f32.mrf.mxu0
        %v578 = vadd.f32 %v531, %v577
        %v579 = vand.u32 %v329, 4294901760
        %580 = vmatmul.f32.gmra.mxu0 %v579
        %v581 = vpop.f32.mrf.mxu0
        %v582 = vadd.f32 %v537, %v581
        %583 = vdwg.mxu0
        %584 = vmatpush.xpose.msra.mxu0 0.0
        %585 = vmatpush.xpose.msra.mxu0 0.0
        %586 = vmatpush.xpose.msra.mxu0 0.0
        %587 = vmatpush.xpose.msra.mxu0 0.0
        %588 = vmatpush.xpose.msra.mxu0 0.0
        %589 = vmatpush.xpose.msra.mxu0 0.0
        %590 = vmatpush.xpose.msra.mxu0 0.0
        %591 = vmatpush.xpose.msra.mxu0 0.0
        %592 = vmatpush.xpose.msra.mxu0 0.0
        %593 = vmatpush.xpose.msra.mxu0 0.0
        %594 = vmatpush.xpose.msra.mxu0 0.0
        %595 = vmatpush.xpose.msra.mxu0 0.0
        %v596 = vand.u32 %v329, 4294901760
        %597 = vmatpush.xpose.msra.mxu0 %v596
        %v598 = vand.u32 %v328, 4294901760
        %599 = vmatpush.xpose.msra.mxu0 %v598
        %v600 = vand.u32 %v327, 4294901760
        %601 = vmatpush.xpose.msra.mxu0 %v600
        %v602 = vand.u32 %v326, 4294901760
        %603 = vmatpush.xpose.msra.mxu0 %v602
        %v604 = vand.u32 %v326, 4294901760
        %605 = vmatmul.f32.gmra.mxu0 %v604
        %v606 = vpop.f32.mrf.mxu0
        %v607 = vadd.f32 %v570, %v606
        %v608 = vand.u32 %v327, 4294901760
        %609 = vmatmul.f32.gmra.mxu0 %v608
        %v610 = vpop.f32.mrf.mxu0
        %v611 = vadd.f32 %v574, %v610
        %v612 = vand.u32 %v328, 4294901760
        %613 = vmatmul.f32.gmra.mxu0 %v612
        %v614 = vpop.f32.mrf.mxu0
        %v615 = vadd.f32 %v578, %v614
        %v616 = vand.u32 %v329, 4294901760
        %617 = vmatmul.f32.gmra.mxu0 %v616
        %v618 = vpop.f32.mrf.mxu0
        %v619 = vadd.f32 %v582, %v618
        %620 = vdwg.mxu0
        %v621 = vadd.f32 %v339, %v607
        %v622 = vadd.f32 %v340, %v611
        %v623 = vadd.f32 %v341, %v615
        %v624 = vadd.f32 %v342, %v619
        %vm625 = vcmask 261120
        %626 = vst.msk [vmem:[%s301] sm:$0xff] %vm625, %v621
        %627 = vst.msk [vmem:[%s301 + $0x8] sm:$0xff] %vm625, %v622
        %628 = vst.msk [vmem:[%s301 + $0x10] sm:$0xff] %vm625, %v623
        %629 = vst.msk [vmem:[%s301 + $0x18] sm:$0xff] %vm625, %v624
        %s630 = sand.u32 %s147, 1
        %s631 = scalar_lea.sflag [#allocation5], %s630
        %s632 = sand.u32 %s147, 1
        %s633 = smul.addr %s632, 32
        %s634 = scalar_lea.vmem [#allocation9], %s633
        // Predicated region
        $region53: #{tpu_custom_call.1} parent=35 // pred_check
          %p635 = pneg %p157
        $region54: #{tpu_custom_call.1} parent=35 // pred_check_branch
          %637 = sbr.rel (%p635) target = $region56
        $region55: #{tpu_custom_call.1} parent=35 // pred_region
          %639 = vsyncadd %s631, 0
          %s640 = smul.addr %s26, 4
          %s641 = smul.addr %s640, 8
          %s642 = scalar_lea.hbm %s4, %s641
          %s643 = sshll.u32 %s634, 4
          %s644 = int_to_ptr.vmem [resolvable:$true] %s643
          %s645 = sshll.u32 %s642, 4
          %s646 = int_to_ptr.hbm [resolvable:$true] %s645
          %651 = dma.vmem_to_hbm [thread:$0]  %s644, 512, %s646, %s631, 128, 128, 8
        $region56: #{tpu_custom_call.1} parent=35 // pred_fallthru
          _
      $region36: #{tpu_custom_call.1} parent=5 // pred_fallthru
        _
      %p652 = scmp.le.s32.totalorder 2, %s17
      // Predicated region
      $region57: #{tpu_custom_call.1} parent=5 // pred_check
        %p653 = pneg %p652
      $region58: #{tpu_custom_call.1} parent=5 // pred_check_branch
        %655 = sbr.rel (%p653) target = $region60
      $region59: #{tpu_custom_call.1} parent=5 // pred_region
        %s656 = ssub.s32 %s17, 2
        // Predicated region
        $region61: #{tpu_custom_call.1} parent=59 // pred_check
          %p657 = pneg %p163
        $region62: #{tpu_custom_call.1} parent=59 // pred_check_branch
          %659 = sbr.rel (%p657) target = $region64
        $region63: #{tpu_custom_call.1} parent=59 // pred_region
          %s660 = sand.u32 %s148, 1
          %s661 = scalar_lea.sflag [#allocation5], %s660
          %s662 = sand.u32 %s148, 1
          %s663 = smul.addr %s662, 32
          %s664 = scalar_lea.vmem [#allocation9], %s663
          %666 = dma.done %s661, 512
        $region64: #{tpu_custom_call.1} parent=59 // pred_fallthru
          _
      $region60: #{tpu_custom_call.1} parent=5 // pred_fallthru
        _
    $region6: #{tpu_custom_call.1} parent=1 // loop_footer
      %s21 = sadd.s32 1, %s17
    $region7: #{tpu_custom_call.1} parent=1 // loop_footer_branch
      %16 = sbr.rel target = $region3
    $region8: #{tpu_custom_call.1} parent=1 // loop_exit
      _
    %667 = vsyncpa [#allocation4], 1
    %s668 = scalar_lea.sflag [#allocation4], 1
    %669 = vsyncpa %s668, 1
    %670 = vsyncpa [#allocation7], 1
    %s671 = scalar_lea.sflag [#allocation7], 1
    %672 = vsyncpa %s671, 1
    %673 = vsyncpa [#allocation5], 1
    %s674 = scalar_lea.sflag [#allocation5], 1
    %675 = vsyncpa %s674, 1

</llo_original>
